<compile_context>
chip_gen: v5e
topology: v5e:2x2
jax: 0.10.0
libtpu: 0.0.40
codegen_flags: <defaults>
</compile_context>

<pallas_src>
import jax
import jax.numpy as jnp
from jax.experimental import pallas as pl
from jax.experimental.pallas import tpu as pltpu


def lstm_forecaster_kernel(x_ref, whh_ref, packed_ref, out_ref):
    """Whole sequence in one invocation; state carried in registers.

    x_ref      : (batch, seq)  f32   -- input, batch-major (transposed in wrapper)
    whh_ref    : (H, 4H)       bf16  -- weight_hh_l0.T with sigmoid pre-scale folded in
    packed_ref : (6, 4H)       f32   -- row 0: weight_ih_l0.T * pre_scale (input_size == 1)
                                        row 1: (b_ih + b_hh) * pre_scale
                                        row 2: Linear.weight padded to 4H (first H lanes)
                                        row 3: Linear.bias at lane 0
                                        row 4: post_mul (0.5 on i/f/o lanes, 1.0 on g lanes)
                                        row 5: post_add (0.5 on i/f/o lanes, 0.0 on g lanes)
    out_ref    : (1, batch)    f32   -- lane-dense predictions
    """
    batch, seq_len = x_ref.shape
    hidden = whh_ref.shape[0]

    # Hoisted loads / constants (kept out of the loop; JAX does not CSE broadcasts).
    xv = x_ref[...]                       # (B, seq)
    whh = whh_ref[...]                    # (H, 4H) bf16, resident across all steps
    wih = packed_ref[0:1, :]              # (1, 4H)  pre-scaled
    bias = packed_ref[1:2, :]             # (1, 4H)  pre-scaled
    wlin = packed_ref[2:3, 0:hidden]      # (1, H)
    blin = packed_ref[3:4, 0:1]           # (1, 1)
    post_mul = packed_ref[4:5, :]         # (1, 4H)
    post_add = packed_ref[5:6, :]         # (1, 4H)

    h = jnp.zeros((batch, hidden), jnp.float32)   # register-carried state
    c = jnp.zeros((batch, hidden), jnp.float32)

    # seq_len is small and static -> fully unrolled recurrence, no grid boundaries.
    for t in range(seq_len):
        # Recurrence matmul: bf16 operands, f32 accumulation (one MXU op per step).
        hh = jnp.dot(h.astype(jnp.bfloat16), whh,
                     preferred_element_type=jnp.float32)              # (B, 4H)

        # input_size == 1: the input projection is a lane broadcast-multiply on the VPU.
        gates = xv[:, t:t + 1] * wih + bias + hh                      # (B, 4H), pre-scaled

        # Single tanh pass over the whole vreg; per-lane (mul, add) turns the i/f/o
        # ranges into sigmoid(orig) and leaves the g range as tanh(orig).
        act = jnp.tanh(gates) * post_mul + post_add                   # (B, 4H)

        i_g = act[:, 0 * hidden:1 * hidden]   # PyTorch gate order: i, f, g, o
        f_g = act[:, 1 * hidden:2 * hidden]
        g_g = act[:, 2 * hidden:3 * hidden]
        o_g = act[:, 3 * hidden:4 * hidden]

        c = f_g * c + i_g * g_g
        h = o_g * jnp.tanh(c)                 # second (last) EUP push of the step

    # Final Linear(H, 1): (1, H) x (B, H)^T -> (1, B); lane-dense epilogue store.
    pred = jax.lax.dot_general(
        wlin, h,
        dimension_numbers=(((1,), (1,)), ((), ())),
        preferred_element_type=jnp.float32)
    out_ref[...] = pred + blin


def forecaster_lstm_forward(input_seq, params):
    """input_seq: (seq_len, batch) float32  ->  (batch,) float32 (== predictions.view(-1))."""
    seq_len, batch = input_seq.shape
    wih_t = params["wih_t"]      # (1, 4H)  == weight_ih_l0.T  (input_size forced to 1 by unsqueeze(2))
    whh_t = params["whh_t"]      # (H, 4H)  == weight_hh_l0.T
    b = params["b"]              # (1, 4H)  == b_ih + b_hh
    wlin = params["wlin"]        # (1, H)   == Linear.weight
    blin = params["blin"]        # (1, 1)   == Linear.bias
    assert wih_t.shape[0] == 1, "forward() unsqueezes to input_size=1"

    hidden = whh_t.shape[0]
    gates4 = 4 * hidden

    # sigmoid(x) = 0.5*tanh(x/2) + 0.5 on the i/f/o lane ranges; plain tanh on g.
    # The 0.5 pre-scale is folded into the weights here (free, outside the kernel, and
    # exact since it is a power-of-two scale).
    lane = jnp.arange(gates4)
    is_g = (lane >= 2 * hidden) & (lane < 3 * hidden)
    pre_scale = jnp.where(is_g, 1.0, 0.5).astype(jnp.float32)
    post_mul = pre_scale
    post_add = jnp.where(is_g, 0.0, 0.5).astype(jnp.float32)

    # One lane-dense packed parameter slab -> one small DMA instead of five.
    packed = jnp.zeros((6, gates4), jnp.float32)
    packed = packed.at[0].set(wih_t[0] * pre_scale)
    packed = packed.at[1].set(b[0] * pre_scale)
    packed = packed.at[2, :hidden].set(wlin[0])
    packed = packed.at[3, 0].set(blin[0, 0])
    packed = packed.at[4].set(post_mul)
    packed = packed.at[5].set(post_add)

    # bf16 recurrence weights (pre-scaled), kept f32 elementwise math in the kernel.
    whh_bf = (whh_t * pre_scale).astype(jnp.bfloat16)                 # (H, 4H)

    # 2-D, batch-major input: a single lane-dense tile instead of seq (·,·,1) padded tiles.
    x2 = input_seq.T.astype(jnp.float32)                              # (batch, seq)

    vmem = pl.BlockSpec(memory_space=pltpu.MemorySpace.VMEM)
    out = pl.pallas_call(
        lstm_forecaster_kernel,
        out_shape=jax.ShapeDtypeStruct((1, batch), jnp.float32),      # lane-dense output
        in_specs=[vmem, vmem, vmem],
        out_specs=vmem,
    )(x2, whh_bf, packed)

    return out.reshape(-1)   # predictions.view(-1)


def init_params(key, input_size=1, hidden_size=32):
    """Deterministic synthetic parameters with the same shapes as nn.LSTM / nn.Linear."""
    k1, k2, k3, k4, k5, k6 = jax.random.split(key, 6)
    H, I = hidden_size, input_size
    scale = 1.0 / jnp.sqrt(H)
    w_ih = jax.random.uniform(k1, (4 * H, I), jnp.float32, -scale, scale)   # weight_ih_l0
    w_hh = jax.random.uniform(k2, (4 * H, H), jnp.float32, -scale, scale)   # weight_hh_l0
    b_ih = jax.random.uniform(k3, (4 * H,), jnp.float32, -scale, scale)
    b_hh = jax.random.uniform(k4, (4 * H,), jnp.float32, -scale, scale)
    w_lin = jax.random.uniform(k5, (1, H), jnp.float32, -scale, scale)      # Linear.weight
    b_lin = jax.random.uniform(k6, (1,), jnp.float32, -scale, scale)        # Linear.bias
    return {
        "wih_t": w_ih.T,                       # (I, 4H)
        "whh_t": w_hh.T,                       # (H, 4H)
        "b": (b_ih + b_hh)[None, :],           # (1, 4H)
        "wlin": w_lin,                         # (1, H)
        "blin": b_lin[None, :],                # (1, 1)
    }


def _reference_forward(input_seq, params, bf16_matmul=False):
    """Pure-JAX reference (PyTorch-equivalent math).  bf16_matmul=True mirrors the
    kernel's bf16 recurrence-matmul operands for a tight numerical check."""
    x = input_seq.astype(jnp.float32)          # (seq, B)
    wih_t, whh_t, b = params["wih_t"], params["whh_t"], params["b"]
    H = whh_t.shape[0]
    B = input_seq.shape[1]
    whh = whh_t.astype(jnp.bfloat16) if bf16_matmul else whh_t
    h = jnp.zeros((B, H), jnp.float32)
    c = jnp.zeros((B, H), jnp.float32)
    for t in range(x.shape[0]):
        hm = h.astype(jnp.bfloat16) if bf16_matmul else h
        gates = x[t][:, None] * wih_t + b + jnp.dot(hm, whh,
                                                    preferred_element_type=jnp.float32)
        i = jax.nn.sigmoid(gates[:, 0 * H:1 * H])
        f = jax.nn.sigmoid(gates[:, 1 * H:2 * H])
        g = jnp.tanh(gates[:, 2 * H:3 * H])
        o = jax.nn.sigmoid(gates[:, 3 * H:4 * H])
        c = f * c + i * g
        h = o * jnp.tanh(c)
    return (h @ params["wlin"].T + params["blin"]).reshape(-1)


if __name__ == "__main__":
    SEQ, BATCH, HIDDEN = 8, 8, 32

    key = jax.random.PRNGKey(0)
    k_x, k_p = jax.random.split(key)
    input_seq = jax.random.normal(k_x, (SEQ, BATCH), dtype=jnp.float32)
    params = init_params(k_p, input_size=1, hidden_size=HIDDEN)

    preds = forecaster_lstm_forward(input_seq, params)
    jax.block_until_ready(preds)
    assert preds.shape == (BATCH,)

    # Tight check against a reference that uses the same bf16 recurrence matmul.
    ref_bf16 = _reference_forward(input_seq, params, bf16_matmul=True)
    assert jnp.allclose(preds, ref_bf16, atol=2e-3, rtol=2e-3)

    # Looser check against the exact f32 (PyTorch-equivalent) math; the delta is only
    # the bf16 rounding of the recurrence matmul operands.
    ref_f32 = _reference_forward(input_seq, params, bf16_matmul=False)
    assert jnp.allclose(preds, ref_f32, atol=1e-2, rtol=1e-2)

    print("KERNEL_OK")
</pallas_src>

<mosaic_0001>
module attributes {stable_mosaic.version = 11 : i64} {
  func.func @lstm_forecaster_kernel(%arg0: memref<8x8xf32, #tpu.memory_space<vmem>>, %arg1: memref<32x128xbf16, #tpu.memory_space<vmem>>, %arg2: memref<6x128xf32, #tpu.memory_space<vmem>>, %arg3: memref<1x8xf32, #tpu.memory_space<vmem>>) attributes {dimension_semantics = [], scalar_prefetch = 0 : i64, scratch_operands = 0 : i64, tpu.core_type = #tpu.core_type<tc>} {
    %c0 = arith.constant 0 : index
    %c0_0 = arith.constant 0 : index
    %0 = vector.load %arg0[%c0, %c0_0] : memref<8x8xf32, #tpu.memory_space<vmem>>, vector<8x8xf32>
    %c0_1 = arith.constant 0 : index
    %c0_2 = arith.constant 0 : index
    %1 = vector.load %arg1[%c0_1, %c0_2] : memref<32x128xbf16, #tpu.memory_space<vmem>>, vector<32x128xbf16>
    %c0_3 = arith.constant 0 : index
    %c0_4 = arith.constant 0 : index
    %2 = vector.load %arg2[%c0_3, %c0_4] : memref<6x128xf32, #tpu.memory_space<vmem>>, vector<1x128xf32>
    %c1 = arith.constant 1 : index
    %c0_5 = arith.constant 0 : index
    %3 = vector.load %arg2[%c1, %c0_5] : memref<6x128xf32, #tpu.memory_space<vmem>>, vector<1x128xf32>
    %c2 = arith.constant 2 : index
    %c0_6 = arith.constant 0 : index
    %4 = vector.load %arg2[%c2, %c0_6] : memref<6x128xf32, #tpu.memory_space<vmem>>, vector<1x32xf32>
    %c3 = arith.constant 3 : index
    %c0_7 = arith.constant 0 : index
    %5 = vector.load %arg2[%c3, %c0_7] : memref<6x128xf32, #tpu.memory_space<vmem>>, vector<1x1xf32>
    %c4 = arith.constant 4 : index
    %c0_8 = arith.constant 0 : index
    %6 = vector.load %arg2[%c4, %c0_8] : memref<6x128xf32, #tpu.memory_space<vmem>>, vector<1x128xf32>
    %c5 = arith.constant 5 : index
    %c0_9 = arith.constant 0 : index
    %7 = vector.load %arg2[%c5, %c0_9] : memref<6x128xf32, #tpu.memory_space<vmem>>, vector<1x128xf32>
    %cst = arith.constant 0.000000e+00 : f32
    %8 = vector.broadcast %cst : f32 to vector<8x32xf32>
    %cst_10 = arith.constant 0.000000e+00 : f32
    %9 = vector.broadcast %cst_10 : f32 to vector<8x32xf32>
    %10 = arith.truncf %8 : vector<8x32xf32> to vector<8x32xbf16>
    %cst_11 = arith.constant dense<0.000000e+00> : vector<8x128xf32>
    %11 = tpu.matmul %10, %1, %cst_11 {dimension_numbers = #tpu.dot_dimension_numbers<[1], [0], [0], [1], [0, 0, 1, 1], [], []>} : vector<8x32xbf16>, vector<32x128xbf16>, vector<8x128xf32> -> vector<8x128xf32>
    %12 = vector.extract_strided_slice %0 {offsets = [0, 0], sizes = [8, 1], strides = [1, 1]} : vector<8x8xf32> to vector<8x1xf32>
    %13 = vector.broadcast %12 : vector<8x1xf32> to vector<8x128xf32>
    %14 = vector.broadcast %2 : vector<1x128xf32> to vector<8x128xf32>
    %15 = arith.mulf %13, %14 : vector<8x128xf32>
    %16 = vector.broadcast %3 : vector<1x128xf32> to vector<8x128xf32>
    %17 = arith.addf %15, %16 : vector<8x128xf32>
    %18 = arith.addf %17, %11 : vector<8x128xf32>
    %19 = math.tanh %18 : vector<8x128xf32>
    %20 = vector.broadcast %6 : vector<1x128xf32> to vector<8x128xf32>
    %21 = arith.mulf %19, %20 : vector<8x128xf32>
    %22 = vector.broadcast %7 : vector<1x128xf32> to vector<8x128xf32>
    %23 = arith.addf %21, %22 : vector<8x128xf32>
    %24 = vector.extract_strided_slice %23 {offsets = [0, 0], sizes = [8, 32], strides = [1, 1]} : vector<8x128xf32> to vector<8x32xf32>
    %25 = vector.extract_strided_slice %23 {offsets = [0, 32], sizes = [8, 32], strides = [1, 1]} : vector<8x128xf32> to vector<8x32xf32>
    %26 = vector.extract_strided_slice %23 {offsets = [0, 64], sizes = [8, 32], strides = [1, 1]} : vector<8x128xf32> to vector<8x32xf32>
    %27 = vector.extract_strided_slice %23 {offsets = [0, 96], sizes = [8, 32], strides = [1, 1]} : vector<8x128xf32> to vector<8x32xf32>
    %28 = arith.mulf %25, %9 : vector<8x32xf32>
    %29 = arith.mulf %24, %26 : vector<8x32xf32>
    %30 = arith.addf %28, %29 : vector<8x32xf32>
    %31 = math.tanh %30 : vector<8x32xf32>
    %32 = arith.mulf %27, %31 : vector<8x32xf32>
    %33 = arith.truncf %32 : vector<8x32xf32> to vector<8x32xbf16>
    %cst_12 = arith.constant dense<0.000000e+00> : vector<8x128xf32>
    %34 = tpu.matmul %33, %1, %cst_12 {dimension_numbers = #tpu.dot_dimension_numbers<[1], [0], [0], [1], [0, 0, 1, 1], [], []>} : vector<8x32xbf16>, vector<32x128xbf16>, vector<8x128xf32> -> vector<8x128xf32>
    %35 = vector.extract_strided_slice %0 {offsets = [0, 1], sizes = [8, 1], strides = [1, 1]} : vector<8x8xf32> to vector<8x1xf32>
    %36 = vector.broadcast %35 : vector<8x1xf32> to vector<8x128xf32>
    %37 = vector.broadcast %2 : vector<1x128xf32> to vector<8x128xf32>
    %38 = arith.mulf %36, %37 : vector<8x128xf32>
    %39 = vector.broadcast %3 : vector<1x128xf32> to vector<8x128xf32>
    %40 = arith.addf %38, %39 : vector<8x128xf32>
    %41 = arith.addf %40, %34 : vector<8x128xf32>
    %42 = math.tanh %41 : vector<8x128xf32>
    %43 = vector.broadcast %6 : vector<1x128xf32> to vector<8x128xf32>
    %44 = arith.mulf %42, %43 : vector<8x128xf32>
    %45 = vector.broadcast %7 : vector<1x128xf32> to vector<8x128xf32>
    %46 = arith.addf %44, %45 : vector<8x128xf32>
    %47 = vector.extract_strided_slice %46 {offsets = [0, 0], sizes = [8, 32], strides = [1, 1]} : vector<8x128xf32> to vector<8x32xf32>
    %48 = vector.extract_strided_slice %46 {offsets = [0, 32], sizes = [8, 32], strides = [1, 1]} : vector<8x128xf32> to vector<8x32xf32>
    %49 = vector.extract_strided_slice %46 {offsets = [0, 64], sizes = [8, 32], strides = [1, 1]} : vector<8x128xf32> to vector<8x32xf32>
    %50 = vector.extract_strided_slice %46 {offsets = [0, 96], sizes = [8, 32], strides = [1, 1]} : vector<8x128xf32> to vector<8x32xf32>
    %51 = arith.mulf %48, %30 : vector<8x32xf32>
    %52 = arith.mulf %47, %49 : vector<8x32xf32>
    %53 = arith.addf %51, %52 : vector<8x32xf32>
    %54 = math.tanh %53 : vector<8x32xf32>
    %55 = arith.mulf %50, %54 : vector<8x32xf32>
    %56 = arith.truncf %55 : vector<8x32xf32> to vector<8x32xbf16>
    %cst_13 = arith.constant dense<0.000000e+00> : vector<8x128xf32>
    %57 = tpu.matmul %56, %1, %cst_13 {dimension_numbers = #tpu.dot_dimension_numbers<[1], [0], [0], [1], [0, 0, 1, 1], [], []>} : vector<8x32xbf16>, vector<32x128xbf16>, vector<8x128xf32> -> vector<8x128xf32>
    %58 = vector.extract_strided_slice %0 {offsets = [0, 2], sizes = [8, 1], strides = [1, 1]} : vector<8x8xf32> to vector<8x1xf32>
    %59 = vector.broadcast %58 : vector<8x1xf32> to vector<8x128xf32>
    %60 = vector.broadcast %2 : vector<1x128xf32> to vector<8x128xf32>
    %61 = arith.mulf %59, %60 : vector<8x128xf32>
    %62 = vector.broadcast %3 : vector<1x128xf32> to vector<8x128xf32>
    %63 = arith.addf %61, %62 : vector<8x128xf32>
    %64 = arith.addf %63, %57 : vector<8x128xf32>
    %65 = math.tanh %64 : vector<8x128xf32>
    %66 = vector.broadcast %6 : vector<1x128xf32> to vector<8x128xf32>
    %67 = arith.mulf %65, %66 : vector<8x128xf32>
    %68 = vector.broadcast %7 : vector<1x128xf32> to vector<8x128xf32>
    %69 = arith.addf %67, %68 : vector<8x128xf32>
    %70 = vector.extract_strided_slice %69 {offsets = [0, 0], sizes = [8, 32], strides = [1, 1]} : vector<8x128xf32> to vector<8x32xf32>
    %71 = vector.extract_strided_slice %69 {offsets = [0, 32], sizes = [8, 32], strides = [1, 1]} : vector<8x128xf32> to vector<8x32xf32>
    %72 = vector.extract_strided_slice %69 {offsets = [0, 64], sizes = [8, 32], strides = [1, 1]} : vector<8x128xf32> to vector<8x32xf32>
    %73 = vector.extract_strided_slice %69 {offsets = [0, 96], sizes = [8, 32], strides = [1, 1]} : vector<8x128xf32> to vector<8x32xf32>
    %74 = arith.mulf %71, %53 : vector<8x32xf32>
    %75 = arith.mulf %70, %72 : vector<8x32xf32>
    %76 = arith.addf %74, %75 : vector<8x32xf32>
    %77 = math.tanh %76 : vector<8x32xf32>
    %78 = arith.mulf %73, %77 : vector<8x32xf32>
    %79 = arith.truncf %78 : vector<8x32xf32> to vector<8x32xbf16>
    %cst_14 = arith.constant dense<0.000000e+00> : vector<8x128xf32>
    %80 = tpu.matmul %79, %1, %cst_14 {dimension_numbers = #tpu.dot_dimension_numbers<[1], [0], [0], [1], [0, 0, 1, 1], [], []>} : vector<8x32xbf16>, vector<32x128xbf16>, vector<8x128xf32> -> vector<8x128xf32>
    %81 = vector.extract_strided_slice %0 {offsets = [0, 3], sizes = [8, 1], strides = [1, 1]} : vector<8x8xf32> to vector<8x1xf32>
    %82 = vector.broadcast %81 : vector<8x1xf32> to vector<8x128xf32>
    %83 = vector.broadcast %2 : vector<1x128xf32> to vector<8x128xf32>
    %84 = arith.mulf %82, %83 : vector<8x128xf32>
    %85 = vector.broadcast %3 : vector<1x128xf32> to vector<8x128xf32>
    %86 = arith.addf %84, %85 : vector<8x128xf32>
    %87 = arith.addf %86, %80 : vector<8x128xf32>
    %88 = math.tanh %87 : vector<8x128xf32>
    %89 = vector.broadcast %6 : vector<1x128xf32> to vector<8x128xf32>
    %90 = arith.mulf %88, %89 : vector<8x128xf32>
    %91 = vector.broadcast %7 : vector<1x128xf32> to vector<8x128xf32>
    %92 = arith.addf %90, %91 : vector<8x128xf32>
    %93 = vector.extract_strided_slice %92 {offsets = [0, 0], sizes = [8, 32], strides = [1, 1]} : vector<8x128xf32> to vector<8x32xf32>
    %94 = vector.extract_strided_slice %92 {offsets = [0, 32], sizes = [8, 32], strides = [1, 1]} : vector<8x128xf32> to vector<8x32xf32>
    %95 = vector.extract_strided_slice %92 {offsets = [0, 64], sizes = [8, 32], strides = [1, 1]} : vector<8x128xf32> to vector<8x32xf32>
    %96 = vector.extract_strided_slice %92 {offsets = [0, 96], sizes = [8, 32], strides = [1, 1]} : vector<8x128xf32> to vector<8x32xf32>
    %97 = arith.mulf %94, %76 : vector<8x32xf32>
    %98 = arith.mulf %93, %95 : vector<8x32xf32>
    %99 = arith.addf %97, %98 : vector<8x32xf32>
    %100 = math.tanh %99 : vector<8x32xf32>
    %101 = arith.mulf %96, %100 : vector<8x32xf32>
    %102 = arith.truncf %101 : vector<8x32xf32> to vector<8x32xbf16>
    %cst_15 = arith.constant dense<0.000000e+00> : vector<8x128xf32>
    %103 = tpu.matmul %102, %1, %cst_15 {dimension_numbers = #tpu.dot_dimension_numbers<[1], [0], [0], [1], [0, 0, 1, 1], [], []>} : vector<8x32xbf16>, vector<32x128xbf16>, vector<8x128xf32> -> vector<8x128xf32>
    %104 = vector.extract_strided_slice %0 {offsets = [0, 4], sizes = [8, 1], strides = [1, 1]} : vector<8x8xf32> to vector<8x1xf32>
    %105 = vector.broadcast %104 : vector<8x1xf32> to vector<8x128xf32>
    %106 = vector.broadcast %2 : vector<1x128xf32> to vector<8x128xf32>
    %107 = arith.mulf %105, %106 : vector<8x128xf32>
    %108 = vector.broadcast %3 : vector<1x128xf32> to vector<8x128xf32>
    %109 = arith.addf %107, %108 : vector<8x128xf32>
    %110 = arith.addf %109, %103 : vector<8x128xf32>
    %111 = math.tanh %110 : vector<8x128xf32>
    %112 = vector.broadcast %6 : vector<1x128xf32> to vector<8x128xf32>
    %113 = arith.mulf %111, %112 : vector<8x128xf32>
    %114 = vector.broadcast %7 : vector<1x128xf32> to vector<8x128xf32>
    %115 = arith.addf %113, %114 : vector<8x128xf32>
    %116 = vector.extract_strided_slice %115 {offsets = [0, 0], sizes = [8, 32], strides = [1, 1]} : vector<8x128xf32> to vector<8x32xf32>
    %117 = vector.extract_strided_slice %115 {offsets = [0, 32], sizes = [8, 32], strides = [1, 1]} : vector<8x128xf32> to vector<8x32xf32>
    %118 = vector.extract_strided_slice %115 {offsets = [0, 64], sizes = [8, 32], strides = [1, 1]} : vector<8x128xf32> to vector<8x32xf32>
    %119 = vector.extract_strided_slice %115 {offsets = [0, 96], sizes = [8, 32], strides = [1, 1]} : vector<8x128xf32> to vector<8x32xf32>
    %120 = arith.mulf %117, %99 : vector<8x32xf32>
    %121 = arith.mulf %116, %118 : vector<8x32xf32>
    %122 = arith.addf %120, %121 : vector<8x32xf32>
    %123 = math.tanh %122 : vector<8x32xf32>
    %124 = arith.mulf %119, %123 : vector<8x32xf32>
    %125 = arith.truncf %124 : vector<8x32xf32> to vector<8x32xbf16>
    %cst_16 = arith.constant dense<0.000000e+00> : vector<8x128xf32>
    %126 = tpu.matmul %125, %1, %cst_16 {dimension_numbers = #tpu.dot_dimension_numbers<[1], [0], [0], [1], [0, 0, 1, 1], [], []>} : vector<8x32xbf16>, vector<32x128xbf16>, vector<8x128xf32> -> vector<8x128xf32>
    %127 = vector.extract_strided_slice %0 {offsets = [0, 5], sizes = [8, 1], strides = [1, 1]} : vector<8x8xf32> to vector<8x1xf32>
    %128 = vector.broadcast %127 : vector<8x1xf32> to vector<8x128xf32>
    %129 = vector.broadcast %2 : vector<1x128xf32> to vector<8x128xf32>
    %130 = arith.mulf %128, %129 : vector<8x128xf32>
    %131 = vector.broadcast %3 : vector<1x128xf32> to vector<8x128xf32>
    %132 = arith.addf %130, %131 : vector<8x128xf32>
    %133 = arith.addf %132, %126 : vector<8x128xf32>
    %134 = math.tanh %133 : vector<8x128xf32>
    %135 = vector.broadcast %6 : vector<1x128xf32> to vector<8x128xf32>
    %136 = arith.mulf %134, %135 : vector<8x128xf32>
    %137 = vector.broadcast %7 : vector<1x128xf32> to vector<8x128xf32>
    %138 = arith.addf %136, %137 : vector<8x128xf32>
    %139 = vector.extract_strided_slice %138 {offsets = [0, 0], sizes = [8, 32], strides = [1, 1]} : vector<8x128xf32> to vector<8x32xf32>
    %140 = vector.extract_strided_slice %138 {offsets = [0, 32], sizes = [8, 32], strides = [1, 1]} : vector<8x128xf32> to vector<8x32xf32>
    %141 = vector.extract_strided_slice %138 {offsets = [0, 64], sizes = [8, 32], strides = [1, 1]} : vector<8x128xf32> to vector<8x32xf32>
    %142 = vector.extract_strided_slice %138 {offsets = [0, 96], sizes = [8, 32], strides = [1, 1]} : vector<8x128xf32> to vector<8x32xf32>
    %143 = arith.mulf %140, %122 : vector<8x32xf32>
    %144 = arith.mulf %139, %141 : vector<8x32xf32>
    %145 = arith.addf %143, %144 : vector<8x32xf32>
    %146 = math.tanh %145 : vector<8x32xf32>
    %147 = arith.mulf %142, %146 : vector<8x32xf32>
    %148 = arith.truncf %147 : vector<8x32xf32> to vector<8x32xbf16>
    %cst_17 = arith.constant dense<0.000000e+00> : vector<8x128xf32>
    %149 = tpu.matmul %148, %1, %cst_17 {dimension_numbers = #tpu.dot_dimension_numbers<[1], [0], [0], [1], [0, 0, 1, 1], [], []>} : vector<8x32xbf16>, vector<32x128xbf16>, vector<8x128xf32> -> vector<8x128xf32>
    %150 = vector.extract_strided_slice %0 {offsets = [0, 6], sizes = [8, 1], strides = [1, 1]} : vector<8x8xf32> to vector<8x1xf32>
    %151 = vector.broadcast %150 : vector<8x1xf32> to vector<8x128xf32>
    %152 = vector.broadcast %2 : vector<1x128xf32> to vector<8x128xf32>
    %153 = arith.mulf %151, %152 : vector<8x128xf32>
    %154 = vector.broadcast %3 : vector<1x128xf32> to vector<8x128xf32>
    %155 = arith.addf %153, %154 : vector<8x128xf32>
    %156 = arith.addf %155, %149 : vector<8x128xf32>
    %157 = math.tanh %156 : vector<8x128xf32>
    %158 = vector.broadcast %6 : vector<1x128xf32> to vector<8x128xf32>
    %159 = arith.mulf %157, %158 : vector<8x128xf32>
    %160 = vector.broadcast %7 : vector<1x128xf32> to vector<8x128xf32>
    %161 = arith.addf %159, %160 : vector<8x128xf32>
    %162 = vector.extract_strided_slice %161 {offsets = [0, 0], sizes = [8, 32], strides = [1, 1]} : vector<8x128xf32> to vector<8x32xf32>
    %163 = vector.extract_strided_slice %161 {offsets = [0, 32], sizes = [8, 32], strides = [1, 1]} : vector<8x128xf32> to vector<8x32xf32>
    %164 = vector.extract_strided_slice %161 {offsets = [0, 64], sizes = [8, 32], strides = [1, 1]} : vector<8x128xf32> to vector<8x32xf32>
    %165 = vector.extract_strided_slice %161 {offsets = [0, 96], sizes = [8, 32], strides = [1, 1]} : vector<8x128xf32> to vector<8x32xf32>
    %166 = arith.mulf %163, %145 : vector<8x32xf32>
    %167 = arith.mulf %162, %164 : vector<8x32xf32>
    %168 = arith.addf %166, %167 : vector<8x32xf32>
    %169 = math.tanh %168 : vector<8x32xf32>
    %170 = arith.mulf %165, %169 : vector<8x32xf32>
    %171 = arith.truncf %170 : vector<8x32xf32> to vector<8x32xbf16>
    %cst_18 = arith.constant dense<0.000000e+00> : vector<8x128xf32>
    %172 = tpu.matmul %171, %1, %cst_18 {dimension_numbers = #tpu.dot_dimension_numbers<[1], [0], [0], [1], [0, 0, 1, 1], [], []>} : vector<8x32xbf16>, vector<32x128xbf16>, vector<8x128xf32> -> vector<8x128xf32>
    %173 = vector.extract_strided_slice %0 {offsets = [0, 7], sizes = [8, 1], strides = [1, 1]} : vector<8x8xf32> to vector<8x1xf32>
    %174 = vector.broadcast %173 : vector<8x1xf32> to vector<8x128xf32>
    %175 = vector.broadcast %2 : vector<1x128xf32> to vector<8x128xf32>
    %176 = arith.mulf %174, %175 : vector<8x128xf32>
    %177 = vector.broadcast %3 : vector<1x128xf32> to vector<8x128xf32>
    %178 = arith.addf %176, %177 : vector<8x128xf32>
    %179 = arith.addf %178, %172 : vector<8x128xf32>
    %180 = math.tanh %179 : vector<8x128xf32>
    %181 = vector.broadcast %6 : vector<1x128xf32> to vector<8x128xf32>
    %182 = arith.mulf %180, %181 : vector<8x128xf32>
    %183 = vector.broadcast %7 : vector<1x128xf32> to vector<8x128xf32>
    %184 = arith.addf %182, %183 : vector<8x128xf32>
    %185 = vector.extract_strided_slice %184 {offsets = [0, 0], sizes = [8, 32], strides = [1, 1]} : vector<8x128xf32> to vector<8x32xf32>
    %186 = vector.extract_strided_slice %184 {offsets = [0, 32], sizes = [8, 32], strides = [1, 1]} : vector<8x128xf32> to vector<8x32xf32>
    %187 = vector.extract_strided_slice %184 {offsets = [0, 64], sizes = [8, 32], strides = [1, 1]} : vector<8x128xf32> to vector<8x32xf32>
    %188 = vector.extract_strided_slice %184 {offsets = [0, 96], sizes = [8, 32], strides = [1, 1]} : vector<8x128xf32> to vector<8x32xf32>
    %189 = arith.mulf %186, %168 : vector<8x32xf32>
    %190 = arith.mulf %185, %187 : vector<8x32xf32>
    %191 = arith.addf %189, %190 : vector<8x32xf32>
    %192 = math.tanh %191 : vector<8x32xf32>
    %193 = arith.mulf %188, %192 : vector<8x32xf32>
    %cst_19 = arith.constant dense<0.000000e+00> : vector<1x8xf32>
    %194 = tpu.matmul %4, %193, %cst_19 {dimension_numbers = #tpu.dot_dimension_numbers<[1], [1], [0], [0], [0, 0, 1, 0], [], []>} : vector<1x32xf32>, vector<8x32xf32>, vector<1x8xf32> -> vector<1x8xf32>
    %195 = vector.broadcast %5 : vector<1x1xf32> to vector<1x8xf32>
    %196 = arith.addf %194, %195 : vector<1x8xf32>
    %c0_20 = arith.constant 0 : index
    %c0_21 = arith.constant 0 : index
    %197 = vector.load %arg3[%c0_20, %c0_21] : memref<1x8xf32, #tpu.memory_space<vmem>>, vector<1x8xf32>
    tpu.vector_store %arg3[%c0_20, %c0_21], %196 {strides = array<i32>} : memref<1x8xf32, #tpu.memory_space<vmem>>, vector<1x8xf32>,
    return
  }
}

</mosaic_0001>

<llo_original>
// kernel: tpu_custom_call.1
$region0: #{tpu_custom_call.1}
  #allocation0 [shape = 'u32[]', space=smem, size = 0x4, offset = 0x4, fixed_abs, tag = 'smem constant byte address 0x4 - core index']
  #allocation1 [shape = 'u32[72,128]{1,0:T(1,128)}', space=vmem, size = 0x9000, scoped, tag = 'internal scratch']
  %s0 = inlined_call_operand.hbm [shape: f32[8,8], index: 0, kind: input, shape index: {}]
  %s1 = inlined_call_operand.hbm [shape: bf16[32,128], index: 1, kind: input, shape index: {}]
  %s2 = inlined_call_operand.hbm [shape: f32[6,128], index: 2, kind: input, shape index: {}]
  %s3 = inlined_call_operand.hbm [shape: f32[1,8], index: 3, kind: output, shape index: {}]
  %s4 = sld [smem:[#allocation0]]
  $region34: #{tpu_custom_call.1} parent=0
    _
  %s6 = ssub.s32 1, %s4
  %s7 = scalar_select 0, %s6, %s4
  $region1: #{tpu_custom_call.1} parent=0
    #allocation2 [shape = 'u8[4096]{0}', space=vmem, size = 0x1000, scoped, tag = 'input window, operand 0, single buffered']
    #allocation3 [shape = 's32[1]{0}', space=sflag, size = 0x4, scoped, tag = 'scoped memory for tpu_custom_call.1']
    #allocation4 [shape = 's32[1]{0}', space=sflag, size = 0x4, scoped, tag = 'scoped memory for tpu_custom_call.1']
    #allocation5 [shape = 'u8[8192]{0}', space=vmem, size = 0x2000, scoped, tag = 'input window, operand 1, single buffered']
    #allocation6 [shape = 's32[1]{0}', space=sflag, size = 0x4, scoped, tag = 'scoped memory for tpu_custom_call.1']
    #allocation7 [shape = 'u8[4096]{0}', space=vmem, size = 0x1000, scoped, tag = 'input window, operand 2, single buffered']
    #allocation8 [shape = 'u8[512]{0}', space=vmem, size = 0x400, scoped, tag = 'output window, operand 0, single buffered']
    %8 = vsyncpa [#allocation3], 0
    %9 = vsyncpa [#allocation6], 0
    %10 = vsyncpa [#allocation4], 0
    // Predicated region
    $region2: #{tpu_custom_call.1} parent=1 // pred_check
      _
    $region3: #{tpu_custom_call.1} parent=1 // pred_check_branch
      %12 = sbr.rel (0) target = $region5
    $region4: #{tpu_custom_call.1} parent=1 // pred_region
      %14 = vsyncadd [#allocation3], 0
      %s16 = sshll.u32 %s0, 4
      %s17 = int_to_ptr.hbm [resolvable:$true] %s16
      %s18 = sshll.u32 [#allocation2], 4
      %s19 = int_to_ptr.vmem [resolvable:$true] %s18
      %21 = dma.hbm_to_vmem [thread:$0]  %s17, 128, %s19, [#allocation3]
    $region5: #{tpu_custom_call.1} parent=1 // pred_fallthru
      _
    // Predicated region
    $region6: #{tpu_custom_call.1} parent=1 // pred_check
      _
    $region7: #{tpu_custom_call.1} parent=1 // pred_check_branch
      %23 = sbr.rel (0) target = $region9
    $region8: #{tpu_custom_call.1} parent=1 // pred_region
      %25 = vsyncadd [#allocation6], 0
      %s26 = sshll.u32 %s1, 4
      %s27 = int_to_ptr.hbm [resolvable:$true] %s26
      %s28 = sshll.u32 [#allocation5], 4
      %s29 = int_to_ptr.vmem [resolvable:$true] %s28
      %34 = dma.hbm_to_vmem [thread:$0]  %s27, 256, %s29, [#allocation6], 64, 64, 4
    $region9: #{tpu_custom_call.1} parent=1 // pred_fallthru
      _
    // Predicated region
    $region10: #{tpu_custom_call.1} parent=1 // pred_check
      _
    $region11: #{tpu_custom_call.1} parent=1 // pred_check_branch
      %36 = sbr.rel (0) target = $region13
    $region12: #{tpu_custom_call.1} parent=1 // pred_region
      %38 = vsyncadd [#allocation6], 0
      %s40 = sshll.u32 %s2, 4
      %s41 = int_to_ptr.hbm [resolvable:$true] %s40
      %s42 = sshll.u32 [#allocation7], 4
      %s43 = int_to_ptr.vmem [resolvable:$true] %s42
      %45 = dma.hbm_to_vmem [thread:$0]  %s41, 128, %s43, [#allocation6]
    $region13: #{tpu_custom_call.1} parent=1 // pred_fallthru
      _
    // Predicated region
    $region14: #{tpu_custom_call.1} parent=1 // pred_check
      _
    $region15: #{tpu_custom_call.1} parent=1 // pred_check_branch
      %47 = sbr.rel (0) target = $region17
    $region16: #{tpu_custom_call.1} parent=1 // pred_region
      %49 = dma.done [#allocation3], 128
    $region17: #{tpu_custom_call.1} parent=1 // pred_fallthru
      _
    // Predicated region
    $region18: #{tpu_custom_call.1} parent=1 // pred_check
      _
    $region19: #{tpu_custom_call.1} parent=1 // pred_check_branch
      %51 = sbr.rel (0) target = $region21
    $region20: #{tpu_custom_call.1} parent=1 // pred_region
      %53 = dma.done [#allocation6], 256
    $region21: #{tpu_custom_call.1} parent=1 // pred_fallthru
      _
    // Predicated region
    $region22: #{tpu_custom_call.1} parent=1 // pred_check
      _
    $region23: #{tpu_custom_call.1} parent=1 // pred_check_branch
      %55 = sbr.rel (0) target = $region25
    $region24: #{tpu_custom_call.1} parent=1 // pred_region
      %57 = dma.done [#allocation6], 128
    $region25: #{tpu_custom_call.1} parent=1 // pred_fallthru
      _
    %v59 = vld [vmem:[#allocation2] sm:$0xff]
    %v60 = vld [vmem:[#allocation5] sm:$0xf]
    %v61 = vld [vmem:[#allocation5 + $0x4] sm:$0xf]
    %v62 = vld [vmem:[#allocation5 + $0x8] sm:$0xf]
    %v63 = vld [vmem:[#allocation5 + $0xc] sm:$0xf]
    %v64 = vld [vmem:[#allocation7] sm:$0x1]
    %v65 = vld [vmem:[#allocation7 + $0x1] sm:$0x1]
    %v66 = vld [vmem:[#allocation7 + $0x2] sm:$0x1]
    %v67 = vld [vmem:[#allocation7 + $0x3] sm:$0x1]
    %v68 = vld [vmem:[#allocation7 + $0x4] sm:$0x1]
    %v69 = vld [vmem:[#allocation7 + $0x5] sm:$0x1]
    %v74 = vunpack.c.l.b16 %v60
    %v75 = vunpack.c.l.b16 %v61
    %v76 = vunpack.c.l.b16 %v62
    %v77 = vunpack.c.l.b16 %v63
    %v78 = vpack.c.b16 %v75, %v74
    %v79 = vpack.c.b16 %v77, %v76
    %vm82 = vcmask 261120
    %v84 = vsel %vm82, 0, 0
    %86 = vmatpush.bf16.msra.mxu0 0
    %87 = vmatpush.bf16.msra.mxu0 0
    %88 = vmatpush.bf16.msra.mxu0 0
    %89 = vmatpush.bf16.msra.mxu0 0
    %90 = vmatpush.bf16.msra.mxu0 0
    %91 = vmatpush.bf16.msra.mxu0 0
    %92 = vmatpush.bf16.msra.mxu0 %v79
    %93 = vmatpush.bf16.msra.mxu0 %v78
    %94 = vmatmul.bf16.gmra.mxu0 %v84
    %v95 = vpop.f32.mrf.mxu0
    %v96 = vadd.f32 0.0, %v95
    %v97 = vpop.f32.mrf.mxu0
    %98 = vdwg.mxu0
    %100 = vset.pattern.permute.xlu0 0
    %101 = vperm.xlu0 %100, %v59
    %v102 = vpop.permute.xlu0 %101
    %v104 = vperm.slane %v64, 0
    %v105 = vmul.f32 %v102, %v104
    %v106 = vperm.slane %v65, 0
    %v107 = vadd.f32 %v105, %v106
    %v108 = vadd.f32 %v107, %v96
    %v109 = vtanh.pop %v108
    %v110 = vperm.slane %v68, 0
    %v111 = vmul.f32 %v109, %v110
    %v112 = vperm.slane %v69, 0
    %v113 = vadd.f32 %v111, %v112
    %v114 = vmul.f32 %v113, 0.0
    %116 = vrot.lane.b32.xlu0 %v113, 64
    %v117 = vpop.permute.xlu0 %116
    %v119 = vmul.f32 %v113, %v117
    %121 = vrot.lane.b32.xlu0 %v119, 32
    %v122 = vpop.permute.xlu0 %121
    %v124 = vadd.f32 %v114, %v122
    %v125 = vtanh.pop %v124
    %127 = vrot.lane.b32.xlu0 %v125, 64
    %v128 = vpop.permute.xlu0 %127
    %v130 = vmul.f32 %v113, %v128
    %v131 = vpack.c.bf16 %v130, %v130
    %133 = vrot.lane.b32.xlu0 %v131, 32
    %v134 = vpop.permute.xlu0 %133
    %v136 = vsel %vm82, %v134, 0
    %138 = vmatpush.bf16.msra.mxu0 0
    %139 = vmatpush.bf16.msra.mxu0 0
    %140 = vmatpush.bf16.msra.mxu0 0
    %141 = vmatpush.bf16.msra.mxu0 0
    %142 = vmatpush.bf16.msra.mxu0 0
    %143 = vmatpush.bf16.msra.mxu0 0
    %144 = vmatpush.bf16.msra.mxu0 %v79
    %145 = vmatpush.bf16.msra.mxu0 %v78
    %146 = vmatmul.bf16.gmra.mxu0 %v136
    %v147 = vpop.f32.mrf.mxu0
    %v148 = vadd.f32 0.0, %v147
    %v149 = vpop.f32.mrf.mxu0
    %150 = vdwg.mxu0
    %151 = vset.pattern.permute.xlu0 1
    %152 = vperm.xlu0 %151, %v59
    %v153 = vpop.permute.xlu0 %152
    %v155 = vmul.f32 %v153, %v104
    %v156 = vadd.f32 %v155, %v106
    %v157 = vadd.f32 %v156, %v148
    %v158 = vtanh.pop %v157
    %v159 = vmul.f32 %v158, %v110
    %v160 = vadd.f32 %v159, %v112
    %v161 = vmul.f32 %v160, %v124
    %163 = vrot.lane.b32.xlu0 %v160, 64
    %v164 = vpop.permute.xlu0 %163
    %v166 = vmul.f32 %v160, %v164
    %168 = vrot.lane.b32.xlu0 %v166, 32
    %v169 = vpop.permute.xlu0 %168
    %v171 = vadd.f32 %v161, %v169
    %v172 = vtanh.pop %v171
    %174 = vrot.lane.b32.xlu0 %v172, 64
    %v175 = vpop.permute.xlu0 %174
    %v177 = vmul.f32 %v160, %v175
    %v178 = vpack.c.bf16 %v177, %v177
    %180 = vrot.lane.b32.xlu0 %v178, 32
    %v181 = vpop.permute.xlu0 %180
    %v183 = vsel %vm82, %v181, 0
    %185 = vmatpush.bf16.msra.mxu0 0
    %186 = vmatpush.bf16.msra.mxu0 0
    %187 = vmatpush.bf16.msra.mxu0 0
    %188 = vmatpush.bf16.msra.mxu0 0
    %189 = vmatpush.bf16.msra.mxu0 0
    %190 = vmatpush.bf16.msra.mxu0 0
    %191 = vmatpush.bf16.msra.mxu0 %v79
    %192 = vmatpush.bf16.msra.mxu0 %v78
    %193 = vmatmul.bf16.gmra.mxu0 %v183
    %v194 = vpop.f32.mrf.mxu0
    %v195 = vadd.f32 0.0, %v194
    %v196 = vpop.f32.mrf.mxu0
    %197 = vdwg.mxu0
    %198 = vset.pattern.permute.xlu0 2
    %199 = vperm.xlu0 %198, %v59
    %v200 = vpop.permute.xlu0 %199
    %v202 = vmul.f32 %v200, %v104
    %v203 = vadd.f32 %v202, %v106
    %v204 = vadd.f32 %v203, %v195
    %v205 = vtanh.pop %v204
    %v206 = vmul.f32 %v205, %v110
    %v207 = vadd.f32 %v206, %v112
    %v208 = vmul.f32 %v207, %v171
    %210 = vrot.lane.b32.xlu0 %v207, 64
    %v211 = vpop.permute.xlu0 %210
    %v213 = vmul.f32 %v207, %v211
    %215 = vrot.lane.b32.xlu0 %v213, 32
    %v216 = vpop.permute.xlu0 %215
    %v218 = vadd.f32 %v208, %v216
    %v219 = vtanh.pop %v218
    %221 = vrot.lane.b32.xlu0 %v219, 64
    %v222 = vpop.permute.xlu0 %221
    %v224 = vmul.f32 %v207, %v222
    %v225 = vpack.c.bf16 %v224, %v224
    %227 = vrot.lane.b32.xlu0 %v225, 32
    %v228 = vpop.permute.xlu0 %227
    %v230 = vsel %vm82, %v228, 0
    %232 = vmatpush.bf16.msra.mxu0 0
    %233 = vmatpush.bf16.msra.mxu0 0
    %234 = vmatpush.bf16.msra.mxu0 0
    %235 = vmatpush.bf16.msra.mxu0 0
    %236 = vmatpush.bf16.msra.mxu0 0
    %237 = vmatpush.bf16.msra.mxu0 0
    %238 = vmatpush.bf16.msra.mxu0 %v79
    %239 = vmatpush.bf16.msra.mxu0 %v78
    %240 = vmatmul.bf16.gmra.mxu0 %v230
    %v241 = vpop.f32.mrf.mxu0
    %v242 = vadd.f32 0.0, %v241
    %v243 = vpop.f32.mrf.mxu0
    %244 = vdwg.mxu0
    %245 = vset.pattern.permute.xlu0 3
    %246 = vperm.xlu0 %245, %v59
    %v247 = vpop.permute.xlu0 %246
    %v249 = vmul.f32 %v247, %v104
    %v250 = vadd.f32 %v249, %v106
    %v251 = vadd.f32 %v250, %v242
    %v252 = vtanh.pop %v251
    %v253 = vmul.f32 %v252, %v110
    %v254 = vadd.f32 %v253, %v112
    %v255 = vmul.f32 %v254, %v218
    %257 = vrot.lane.b32.xlu0 %v254, 64
    %v258 = vpop.permute.xlu0 %257
    %v260 = vmul.f32 %v254, %v258
    %262 = vrot.lane.b32.xlu0 %v260, 32
    %v263 = vpop.permute.xlu0 %262
    %v265 = vadd.f32 %v255, %v263
    %v266 = vtanh.pop %v265
    %268 = vrot.lane.b32.xlu0 %v266, 64
    %v269 = vpop.permute.xlu0 %268
    %v271 = vmul.f32 %v254, %v269
    %v272 = vpack.c.bf16 %v271, %v271
    %274 = vrot.lane.b32.xlu0 %v272, 32
    %v275 = vpop.permute.xlu0 %274
    %v277 = vsel %vm82, %v275, 0
    %279 = vmatpush.bf16.msra.mxu0 0
    %280 = vmatpush.bf16.msra.mxu0 0
    %281 = vmatpush.bf16.msra.mxu0 0
    %282 = vmatpush.bf16.msra.mxu0 0
    %283 = vmatpush.bf16.msra.mxu0 0
    %284 = vmatpush.bf16.msra.mxu0 0
    %285 = vmatpush.bf16.msra.mxu0 %v79
    %286 = vmatpush.bf16.msra.mxu0 %v78
    %287 = vmatmul.bf16.gmra.mxu0 %v277
    %v288 = vpop.f32.mrf.mxu0
    %v289 = vadd.f32 0.0, %v288
    %v290 = vpop.f32.mrf.mxu0
    %291 = vdwg.mxu0
    %292 = vset.pattern.permute.xlu0 4
    %293 = vperm.xlu0 %292, %v59
    %v294 = vpop.permute.xlu0 %293
    %v296 = vmul.f32 %v294, %v104
    %v297 = vadd.f32 %v296, %v106
    %v298 = vadd.f32 %v297, %v289
    %v299 = vtanh.pop %v298
    %v300 = vmul.f32 %v299, %v110
    %v301 = vadd.f32 %v300, %v112
    %v302 = vmul.f32 %v301, %v265
    %304 = vrot.lane.b32.xlu0 %v301, 64
    %v305 = vpop.permute.xlu0 %304
    %v307 = vmul.f32 %v301, %v305
    %309 = vrot.lane.b32.xlu0 %v307, 32
    %v310 = vpop.permute.xlu0 %309
    %v312 = vadd.f32 %v302, %v310
    %v313 = vtanh.pop %v312
    %315 = vrot.lane.b32.xlu0 %v313, 64
    %v316 = vpop.permute.xlu0 %315
    %v318 = vmul.f32 %v301, %v316
    %v319 = vpack.c.bf16 %v318, %v318
    %321 = vrot.lane.b32.xlu0 %v319, 32
    %v322 = vpop.permute.xlu0 %321
    %v324 = vsel %vm82, %v322, 0
    %326 = vmatpush.bf16.msra.mxu0 0
    %327 = vmatpush.bf16.msra.mxu0 0
    %328 = vmatpush.bf16.msra.mxu0 0
    %329 = vmatpush.bf16.msra.mxu0 0
    %330 = vmatpush.bf16.msra.mxu0 0
    %331 = vmatpush.bf16.msra.mxu0 0
    %332 = vmatpush.bf16.msra.mxu0 %v79
    %333 = vmatpush.bf16.msra.mxu0 %v78
    %334 = vmatmul.bf16.gmra.mxu0 %v324
    %v335 = vpop.f32.mrf.mxu0
    %v336 = vadd.f32 0.0, %v335
    %v337 = vpop.f32.mrf.mxu0
    %338 = vdwg.mxu0
    %339 = vset.pattern.permute.xlu0 5
    %340 = vperm.xlu0 %339, %v59
    %v341 = vpop.permute.xlu0 %340
    %v343 = vmul.f32 %v341, %v104
    %v344 = vadd.f32 %v343, %v106
    %v345 = vadd.f32 %v344, %v336
    %v346 = vtanh.pop %v345
    %v347 = vmul.f32 %v346, %v110
    %v348 = vadd.f32 %v347, %v112
    %v349 = vmul.f32 %v348, %v312
    %351 = vrot.lane.b32.xlu0 %v348, 64
    %v352 = vpop.permute.xlu0 %351
    %v354 = vmul.f32 %v348, %v352
    %356 = vrot.lane.b32.xlu0 %v354, 32
    %v357 = vpop.permute.xlu0 %356
    %v359 = vadd.f32 %v349, %v357
    %v360 = vtanh.pop %v359
    %362 = vrot.lane.b32.xlu0 %v360, 64
    %v363 = vpop.permute.xlu0 %362
    %v365 = vmul.f32 %v348, %v363
    %v366 = vpack.c.bf16 %v365, %v365
    %368 = vrot.lane.b32.xlu0 %v366, 32
    %v369 = vpop.permute.xlu0 %368
    %v371 = vsel %vm82, %v369, 0
    %373 = vmatpush.bf16.msra.mxu0 0
    %374 = vmatpush.bf16.msra.mxu0 0
    %375 = vmatpush.bf16.msra.mxu0 0
    %376 = vmatpush.bf16.msra.mxu0 0
    %377 = vmatpush.bf16.msra.mxu0 0
    %378 = vmatpush.bf16.msra.mxu0 0
    %379 = vmatpush.bf16.msra.mxu0 %v79
    %380 = vmatpush.bf16.msra.mxu0 %v78
    %381 = vmatmul.bf16.gmra.mxu0 %v371
    %v382 = vpop.f32.mrf.mxu0
    %v383 = vadd.f32 0.0, %v382
    %v384 = vpop.f32.mrf.mxu0
    %385 = vdwg.mxu0
    %386 = vset.pattern.permute.xlu0 6
    %387 = vperm.xlu0 %386, %v59
    %v388 = vpop.permute.xlu0 %387
    %v390 = vmul.f32 %v388, %v104
    %v391 = vadd.f32 %v390, %v106
    %v392 = vadd.f32 %v391, %v383
    %v393 = vtanh.pop %v392
    %v394 = vmul.f32 %v393, %v110
    %v395 = vadd.f32 %v394, %v112
    %v396 = vmul.f32 %v395, %v359
    %398 = vrot.lane.b32.xlu0 %v395, 64
    %v399 = vpop.permute.xlu0 %398
    %v401 = vmul.f32 %v395, %v399
    %403 = vrot.lane.b32.xlu0 %v401, 32
    %v404 = vpop.permute.xlu0 %403
    %v406 = vadd.f32 %v396, %v404
    %v407 = vtanh.pop %v406
    %409 = vrot.lane.b32.xlu0 %v407, 64
    %v410 = vpop.permute.xlu0 %409
    %v412 = vmul.f32 %v395, %v410
    %v413 = vpack.c.bf16 %v412, %v412
    %415 = vrot.lane.b32.xlu0 %v413, 32
    %v416 = vpop.permute.xlu0 %415
    %v418 = vsel %vm82, %v416, 0
    %420 = vmatpush.bf16.msra.mxu0 0
    %421 = vmatpush.bf16.msra.mxu0 0
    %422 = vmatpush.bf16.msra.mxu0 0
    %423 = vmatpush.bf16.msra.mxu0 0
    %424 = vmatpush.bf16.msra.mxu0 0
    %425 = vmatpush.bf16.msra.mxu0 0
    %426 = vmatpush.bf16.msra.mxu0 %v79
    %427 = vmatpush.bf16.msra.mxu0 %v78
    %428 = vmatmul.bf16.gmra.mxu0 %v418
    %v429 = vpop.f32.mrf.mxu0
    %v430 = vadd.f32 0.0, %v429
    %v431 = vpop.f32.mrf.mxu0
    %432 = vdwg.mxu0
    %433 = vset.pattern.permute.xlu0 7
    %434 = vperm.xlu0 %433, %v59
    %v435 = vpop.permute.xlu0 %434
    %v437 = vmul.f32 %v435, %v104
    %v438 = vadd.f32 %v437, %v106
    %v439 = vadd.f32 %v438, %v430
    %v440 = vtanh.pop %v439
    %v441 = vmul.f32 %v440, %v110
    %v442 = vadd.f32 %v441, %v112
    %v443 = vmul.f32 %v442, %v406
    %445 = vrot.lane.b32.xlu0 %v442, 64
    %v446 = vpop.permute.xlu0 %445
    %v448 = vmul.f32 %v442, %v446
    %450 = vrot.lane.b32.xlu0 %v448, 32
    %v451 = vpop.permute.xlu0 %450
    %v453 = vadd.f32 %v443, %v451
    %v454 = vtanh.pop %v453
    %456 = vrot.lane.b32.xlu0 %v454, 64
    %v457 = vpop.permute.xlu0 %456
    %v459 = vmul.f32 %v442, %v457
    %461 = vset.pattern.permute.xlu0 0
    %462 = vperm.xlu0 %461, %v67
    %v463 = vpop.permute.xlu0 %462
    %466 = vrot.lane.b32.xlu0 %v459, 32
    %v467 = vpop.permute.xlu0 %466
    %v469 = vsel %vm82, %v66, 0
    %v471 = vsel %vm82, %v467, 0
    %473 = vmatpush.xpose.msra.mxu0 0.0
    %474 = vmatpush.xpose.msra.mxu0 0.0
    %475 = vmatpush.xpose.msra.mxu0 0.0
    %476 = vmatpush.xpose.msra.mxu0 0.0
    %477 = vmatpush.xpose.msra.mxu0 0.0
    %478 = vmatpush.xpose.msra.mxu0 0.0
    %479 = vmatpush.xpose.msra.mxu0 0.0
    %480 = vmatpush.xpose.msra.mxu0 0.0
    %481 = vmatpush.xpose.msra.mxu0 0.0
    %482 = vmatpush.xpose.msra.mxu0 0.0
    %483 = vmatpush.xpose.msra.mxu0 0.0
    %484 = vmatpush.xpose.msra.mxu0 0.0
    %485 = vmatpush.xpose.msra.mxu0 0.0
    %486 = vmatpush.xpose.msra.mxu0 0.0
    %487 = vmatpush.xpose.msra.mxu0 0.0
    %488 = vmatpush.xpose.msra.mxu0 %v471
    %489 = vmatmul.f32.gmra.mxu0 %v469
    %v490 = vpop.f32.mrf.mxu0
    %v491 = vadd.f32 %v463, %v490
    %492 = vdwg.mxu0
    %vm493 = vcmask 57344
    %494 = vst.msk [vmem:[#allocation8] sm:$0x1] %vm493, %v491
    // Predicated region
    $region26: #{tpu_custom_call.1} parent=1 // pred_check
      _
    $region27: #{tpu_custom_call.1} parent=1 // pred_check_branch
      %496 = sbr.rel (0) target = $region29
    $region28: #{tpu_custom_call.1} parent=1 // pred_region
      %498 = vsyncadd [#allocation4], 0
      %s500 = sshll.u32 [#allocation8], 4
      %s501 = int_to_ptr.vmem [resolvable:$true] %s500
      %s502 = sshll.u32 %s3, 4
      %s503 = int_to_ptr.hbm [resolvable:$true] %s502
      %505 = dma.vmem_to_hbm [thread:$0]  %s501, 16, %s503, [#allocation4]
    $region29: #{tpu_custom_call.1} parent=1 // pred_fallthru
      _
    // Predicated region
    $region30: #{tpu_custom_call.1} parent=1 // pred_check
      _
    $region31: #{tpu_custom_call.1} parent=1 // pred_check_branch
      %507 = sbr.rel (0) target = $region33
    $region32: #{tpu_custom_call.1} parent=1 // pred_region
      %509 = dma.done [#allocation4], 16
    $region33: #{tpu_custom_call.1} parent=1 // pred_fallthru
      _
    %510 = vsyncpa [#allocation3], 1
    %511 = vsyncpa [#allocation6], 1
    %512 = vsyncpa [#allocation4], 1

</llo_original>
